<compile_context>
chip_gen: v5e
topology: v5e:2x2
jax: 0.10.0
libtpu: 0.0.40
codegen_flags: <defaults>
</compile_context>

<pallas_src>
import jax
import jax.numpy as jnp
import numpy as np
from jax.experimental import pallas as pl
from jax.experimental.pallas import tpu as pltpu


# ----------------------------- configuration ------------------------------
TB_DEFAULT = 4096           # batch rows per grid step (lane dim of all tiles)
P = 14                      # input_size = 4*3 + 2
P_PAD = 16                  # P padded; row P (=14) is the all-ones bias row
K_FM = 10                   # FM latent dim
K_PAD = 16                  # padded to a multiple of 8
H = 32                      # all three DNN hidden layers
WF_ROWS = K_PAD + H         # 48 rows in the fused [v | w1]^T matmul


# ----------------------------- Pallas kernel ------------------------------
def deepfm_kernel(xT_ref, wfT_ref, w23T_ref, cols16_ref, colsH_ref, out_ref):
    xT = xT_ref[...]                       # (P_PAD, TB) bf16, row P == 1.0
    xf = xT.astype(jnp.float32)            # f32 copy for the VPU-side math

    # Fused x-side matmul.  Row groups: [0:16)=v^T (pad rows zero),
    # [16:48)=w1^T with b1 folded into column P (paired with the ones row).
    sT = jnp.dot(wfT_ref[...], xT,
                 preferred_element_type=jnp.float32)             # (48, TB) f32
    xvT = sT[0:K_PAD, :]                                         # (16, TB); rows >= K_FM are 0
    h = jnp.maximum(sT[K_PAD:, :], 0.0).astype(jnp.bfloat16)     # (H, TB) = relu(x@w1 + b1)

    # Linear part: VPU multiply + sublane reduce.  Row P of the w_lin column
    # holds (b_lin + global bias), so both scalar biases come along for free.
    wlin_col = cols16_ref[:, 0:1]                                # (P_PAD, 1) f32
    v2sum_col = cols16_ref[:, 1:2]                               # (P_PAD, 1) f32, row P = 0
    linT = jnp.sum(xf * wlin_col, axis=0, keepdims=True)         # (1, TB)

    # FM pair interactions without a second matmul:
    #   0.5 * ( sum_k (x v)_k^2  -  sum_p x_p^2 * sum_k v_{p,k}^2 )
    pair1 = jnp.sum(xvT * xvT, axis=0, keepdims=True)            # (1, TB)
    pair2 = jnp.sum(xf * xf * v2sum_col, axis=0, keepdims=True)  # (1, TB), squared in f32
    pairT = pair1 - pair2

    # DNN tower (dnn_dropout = 0.0 -> identity).
    b2 = colsH_ref[:, 0:1]                                       # (H, 1) f32
    b3 = colsH_ref[:, 1:2]
    wout = colsH_ref[:, 2:3]
    h = jnp.maximum(jnp.dot(w23T_ref[0:H, :], h,
                            preferred_element_type=jnp.float32) + b2,
                    0.0).astype(jnp.bfloat16)                    # (H, TB)
    h = jnp.maximum(jnp.dot(w23T_ref[H:, :], h,
                            preferred_element_type=jnp.float32) + b3,
                    0.0)                                         # (H, TB) f32

    # (H -> 1) output projection as VPU multiply + sublane reduce.
    dnnT = jnp.sum(h * wout, axis=0, keepdims=True)              # (1, TB)

    out_ref[...] = jax.nn.sigmoid(linT + 0.5 * pairT + dnnT)     # lane-dense (1, TB)


# ------------------------------- wrapper -----------------------------------
def _choose_tb(batch, desired=TB_DEFAULT):
    """Lane tile: a multiple of 128, capped at `desired`, and (when the batch
    is large enough) sized so there are >= 2 grid steps for the v7x 2-TC
    split.  At the cap, per-step intermediates stay a few MiB of VMEM."""
    half = (batch + 1) // 2
    tb = ((half + 127) // 128) * 128
    return max(128, min(desired, tb))


def deepfm_pallas(input_x, params, tb=None):
    """input_x: (B, P) f32, already assembled (dense ++ sparse-embeddings)."""
    B, p = input_x.shape
    assert p == P
    if tb is None:
        tb = _choose_tb(B)
    n_tiles = pl.cdiv(B, tb)
    b_pad = n_tiles * tb

    # x^T, bf16, built in one transpose+pad pass: (P_PAD, b_pad).  Row P is
    # the all-ones bias row used to fold b1 / b_lin / global bias into the
    # weight columns.
    xT = jnp.pad(input_x.astype(jnp.bfloat16).T,
                 ((0, P_PAD - p), (0, b_pad - B)))
    xT = xT.at[p, :].set(1.0)

    # Fused [v | w1]^T: (48, P_PAD) bf16; column P of the w1 group holds b1.
    wfT = jnp.zeros((WF_ROWS, P_PAD), jnp.float32)
    wfT = wfT.at[0:K_FM, :p].set(params["v"].T)
    wfT = wfT.at[K_PAD:, :p].set(params["w1"].T)
    wfT = wfT.at[K_PAD:, p].set(params["b1"].reshape(H))
    wfT = wfT.astype(jnp.bfloat16)

    # Stacked [w2^T ; w3^T]: (2H, H) bf16 (one resident block, two static views).
    w23T = jnp.concatenate([params["w2"].T, params["w3"].T],
                           axis=0).astype(jnp.bfloat16)

    # Small f32 columns.  The v^2 column-sum uses the bf16-rounded v so it
    # matches the quantized operand the MXU xv path sees.
    vq = params["v"].astype(jnp.bfloat16).astype(jnp.float32)
    wlin_col = jnp.zeros((P_PAD,), jnp.float32).at[:p].set(params["w_lin"][:, 0])
    wlin_col = wlin_col.at[p].set(params["b_lin"][0, 0] + params["bias"][0, 0])
    v2_col = jnp.zeros((P_PAD,), jnp.float32).at[:p].set(jnp.sum(vq ** 2, axis=1))
    cols16 = jnp.stack([wlin_col, v2_col], axis=1)               # (P_PAD, 2) f32

    colsH = jnp.stack([params["b2"].reshape(H), params["b3"].reshape(H),
                       params["w_out"].reshape(H)], axis=1)      # (H, 3) f32

    # Advisory cost estimate so XLA can overlap the embedding-gather glue.
    mxu_flops = 2 * b_pad * (WF_ROWS * P_PAD + 2 * H * H)
    vpu_flops = b_pad * (8 * P_PAD + 6 * H)
    bytes_accessed = (xT.size * 2 + wfT.size * 2 + w23T.size * 2
                      + cols16.size * 4 + colsH.size * 4 + b_pad * 4)

    out = pl.pallas_call(
        deepfm_kernel,
        out_shape=jax.ShapeDtypeStruct((n_tiles, tb), jnp.float32),
        grid=(n_tiles,),
        in_specs=[
            pl.BlockSpec((P_PAD, tb), lambda i: (0, i)),       # x^T, batch-tiled
            pl.BlockSpec((WF_ROWS, P_PAD), lambda i: (0, 0)),  # fused [v | w1]^T
            pl.BlockSpec((2 * H, H), lambda i: (0, 0)),        # [w2^T ; w3^T]
            pl.BlockSpec((P_PAD, 2), lambda i: (0, 0)),        # [w_lin | sum_k v^2]
            pl.BlockSpec((H, 3), lambda i: (0, 0)),            # [b2 | b3 | w_out]
        ],
        out_specs=pl.BlockSpec((1, tb), lambda i: (i, 0)),     # lane-dense row / step
        compiler_params=pltpu.CompilerParams(
            dimension_semantics=("parallel",),
            vmem_limit_bytes=48 * 1024 * 1024),
        cost_estimate=pl.CostEstimate(flops=mxu_flops + vpu_flops,
                                      transcendentals=b_pad,
                                      bytes_accessed=bytes_accessed),
    )(xT, wfT, w23T, cols16, colsH)

    # Rows >= B are batch padding (they hold bias-only garbage logits) and are
    # sliced off here — do not remove the [:B] slice.
    return out.reshape(-1)[:B].reshape(B, 1)


# --------------------------- plain-JAX reference ---------------------------
def deepfm_reference(input_x, params):
    lin = input_x @ params["w_lin"] + params["b_lin"]
    xv = input_x @ params["v"]
    x2v2 = (input_x ** 2) @ (params["v"] ** 2)
    pair = jnp.sum(xv ** 2 - x2v2, axis=1, keepdims=True)
    fm_logit = lin + 0.5 * pair
    h = input_x
    h = jax.nn.relu(h @ params["w1"] + params["b1"])
    h = jax.nn.relu(h @ params["w2"] + params["b2"])
    h = jax.nn.relu(h @ params["w3"] + params["b3"])
    dnn_logit = h @ params["w_out"]
    return jax.nn.sigmoid(fm_logit + dnn_logit + params["bias"][0, 0])


# ------------------------------- main --------------------------------------
if __name__ == "__main__":
    # Small synthetic config consistent with the module's __init__:
    #   3 sparse features (vocab 10 each), 2 dense features,
    #   embedding_size = 4  ->  input_size p = 4*3 + 2 = 14
    #   FM latent dim k = 10, dnn_hidden_units = [32, 32, 32]
    sparse_feats = ["C1", "C2", "C3"]
    dense_feats = ["D1", "D2"]
    feat_order = sparse_feats + dense_feats
    vocab = {"C1": 10, "C2": 10, "C3": 10}
    emb_size = 4
    batch = 8
    hidden = [H, H, H]
    init_std = 1e-4

    key = jax.random.PRNGKey(0)
    keys = jax.random.split(key, 16)

    emb_tables = {
        f: init_std * jax.random.normal(keys[i], (vocab[f], emb_size), jnp.float32)
        for i, f in enumerate(sparse_feats)
    }

    w_lin = 0.1 * jax.random.normal(keys[3], (P, 1), jnp.float32)
    b_lin = 0.1 * jax.random.normal(keys[4], (1, 1), jnp.float32)
    v = jax.random.uniform(keys[5], (P, K_FM), jnp.float32, -0.01, 0.01)

    dims = [P] + hidden
    w1 = init_std * jax.random.normal(keys[6], (dims[0], dims[1]), jnp.float32)
    w2 = init_std * jax.random.normal(keys[7], (dims[1], dims[2]), jnp.float32)
    w3 = init_std * jax.random.normal(keys[8], (dims[2], dims[3]), jnp.float32)
    b1 = jnp.zeros((1, dims[1]), jnp.float32)
    b2 = jnp.zeros((1, dims[2]), jnp.float32)
    b3 = jnp.zeros((1, dims[3]), jnp.float32)
    w_out = init_std * jax.random.normal(keys[9], (dims[3], 1), jnp.float32)
    bias = jnp.zeros((1, 1), jnp.float32)

    params = dict(w_lin=w_lin, b_lin=b_lin, v=v,
                  w1=w1, b1=b1, w2=w2, b2=b2, w3=w3, b3=b3,
                  w_out=w_out, bias=bias)

    # Raw input x: (batch, num_feats) — sparse columns hold integer ids (as
    # floats, like the torch code which calls .long()), dense columns floats.
    sparse_ids = jax.random.randint(keys[10], (batch, len(sparse_feats)), 0, 10)
    dense_vals = jax.random.normal(keys[11], (batch, len(dense_feats)), jnp.float32)
    x_raw = jnp.concatenate([sparse_ids.astype(jnp.float32), dense_vals], axis=1)

    # ---- glue: build input_x exactly like deepfm.forward ----
    feature_index = {f: i for i, f in enumerate(feat_order)}
    sparse_embedding = jnp.concatenate(
        [emb_tables[f][x_raw[:, feature_index[f]].astype(jnp.int32)]
         for f in sparse_feats], axis=-1)                           # (B, 12)
    dense_value = jnp.stack(
        [x_raw[:, feature_index[f]] for f in dense_feats], axis=1)  # (B, 2)
    input_x = jnp.concatenate((dense_value, sparse_embedding), axis=1)  # (B, 14)

    y = deepfm_pallas(input_x, params)
    y = jax.block_until_ready(y)
    assert y.shape == (batch, 1)

    # Tight check against a reference that uses the same bf16-quantized
    # operands the kernel's MXU paths see (isolates kernel correctness).
    def _q(a):
        return a.astype(jnp.bfloat16).astype(jnp.float32)
    params_q = dict(params)
    for name in ("v", "w1", "w2", "w3"):
        params_q[name] = _q(params[name])
    y_ref_q = deepfm_reference(_q(input_x), params_q)
    np.testing.assert_allclose(np.asarray(y), np.asarray(y_ref_q),
                               rtol=1e-3, atol=1e-4)

    # Loose check against the pure-f32 reference (bf16 operands are an
    # optimization-induced tolerance change).
    y_ref = deepfm_reference(input_x, params)
    np.testing.assert_allclose(np.asarray(y), np.asarray(y_ref),
                               rtol=5e-2, atol=1e-2)

    print("KERNEL_OK")
</pallas_src>

<mosaic_0001>
module attributes {stable_mosaic.version = 11 : i64} {
  func.func @deepfm_kernel(%arg0: i32, %arg1: memref<16x128xbf16, #tpu.memory_space<vmem>>, %arg2: memref<48x16xbf16, #tpu.memory_space<vmem>>, %arg3: memref<64x32xbf16, #tpu.memory_space<vmem>>, %arg4: memref<16x2xf32, #tpu.memory_space<vmem>>, %arg5: memref<32x3xf32, #tpu.memory_space<vmem>>, %arg6: memref<1x128xf32, #tpu.memory_space<vmem>>) attributes {dimension_semantics = [#tpu.dimension_semantics<parallel>], iteration_bounds = array<i64: 1>, scalar_prefetch = 0 : i64, scratch_operands = 0 : i64, tpu.core_type = #tpu.core_type<tc>, window_params = [{transform_indices = @transform_0, window_bounds = array<i64: 16, 128>}, {pipeline_mode = #tpu.pipeline_mode<synchronous>, transform_indices = @transform_1, window_bounds = array<i64: 48, 16>}, {pipeline_mode = #tpu.pipeline_mode<synchronous>, transform_indices = @transform_2, window_bounds = array<i64: 64, 32>}, {pipeline_mode = #tpu.pipeline_mode<synchronous>, transform_indices = @transform_3, window_bounds = array<i64: 16, 2>}, {pipeline_mode = #tpu.pipeline_mode<synchronous>, transform_indices = @transform_4, window_bounds = array<i64: 32, 3>}, {transform_indices = @transform_5, window_bounds = array<i64: 1, 128>}]} {
    %c0 = arith.constant 0 : index
    %c0_0 = arith.constant 0 : index
    %0 = vector.load %arg1[%c0, %c0_0] : memref<16x128xbf16, #tpu.memory_space<vmem>>, vector<16x128xbf16>
    %1 = arith.extf %0 : vector<16x128xbf16> to vector<16x128xf32>
    %c0_1 = arith.constant 0 : index
    %c0_2 = arith.constant 0 : index
    %2 = vector.load %arg2[%c0_1, %c0_2] : memref<48x16xbf16, #tpu.memory_space<vmem>>, vector<48x16xbf16>
    %cst = arith.constant dense<0.000000e+00> : vector<48x128xf32>
    %3 = tpu.matmul %2, %0, %cst {dimension_numbers = #tpu.dot_dimension_numbers<[1], [0], [0], [1], [0, 0, 1, 1], [], []>} : vector<48x16xbf16>, vector<16x128xbf16>, vector<48x128xf32> -> vector<48x128xf32>
    %4 = vector.extract_strided_slice %3 {offsets = [0, 0], sizes = [16, 128], strides = [1, 1]} : vector<48x128xf32> to vector<16x128xf32>
    %5 = vector.extract_strided_slice %3 {offsets = [16, 0], sizes = [32, 128], strides = [1, 1]} : vector<48x128xf32> to vector<32x128xf32>
    %cst_3 = arith.constant 0.000000e+00 : f32
    %6 = vector.broadcast %cst_3 : f32 to vector<32x128xf32>
    %7 = arith.maximumf %5, %6 : vector<32x128xf32>
    %8 = arith.truncf %7 : vector<32x128xf32> to vector<32x128xbf16>
    %c0_4 = arith.constant 0 : index
    %c0_5 = arith.constant 0 : index
    %9 = vector.load %arg4[%c0_4, %c0_5] : memref<16x2xf32, #tpu.memory_space<vmem>>, vector<16x1xf32>
    %c0_6 = arith.constant 0 : index
    %c1 = arith.constant 1 : index
    %10 = vector.load %arg4[%c0_6, %c1] : memref<16x2xf32, #tpu.memory_space<vmem>>, vector<16x1xf32>
    %11 = vector.broadcast %9 : vector<16x1xf32> to vector<16x128xf32>
    %12 = arith.mulf %1, %11 : vector<16x128xf32>
    %cst_7 = arith.constant dense<0.000000e+00> : vector<128xf32>
    %13 = vector.multi_reduction <add>, %12, %cst_7 [0] : vector<16x128xf32> to vector<128xf32>
    %14 = vector.shape_cast %13 : vector<128xf32> to vector<1x128xf32>
    %15 = arith.mulf %4, %4 : vector<16x128xf32>
    %cst_8 = arith.constant dense<0.000000e+00> : vector<128xf32>
    %16 = vector.multi_reduction <add>, %15, %cst_8 [0] : vector<16x128xf32> to vector<128xf32>
    %17 = vector.shape_cast %16 : vector<128xf32> to vector<1x128xf32>
    %18 = arith.mulf %1, %1 : vector<16x128xf32>
    %19 = vector.broadcast %10 : vector<16x1xf32> to vector<16x128xf32>
    %20 = arith.mulf %18, %19 : vector<16x128xf32>
    %cst_9 = arith.constant dense<0.000000e+00> : vector<128xf32>
    %21 = vector.multi_reduction <add>, %20, %cst_9 [0] : vector<16x128xf32> to vector<128xf32>
    %22 = vector.shape_cast %21 : vector<128xf32> to vector<1x128xf32>
    %23 = arith.subf %17, %22 : vector<1x128xf32>
    %c0_10 = arith.constant 0 : index
    %c0_11 = arith.constant 0 : index
    %24 = vector.load %arg5[%c0_10, %c0_11] : memref<32x3xf32, #tpu.memory_space<vmem>>, vector<32x1xf32>
    %c0_12 = arith.constant 0 : index
    %c1_13 = arith.constant 1 : index
    %25 = vector.load %arg5[%c0_12, %c1_13] : memref<32x3xf32, #tpu.memory_space<vmem>>, vector<32x1xf32>
    %c0_14 = arith.constant 0 : index
    %c2 = arith.constant 2 : index
    %26 = vector.load %arg5[%c0_14, %c2] : memref<32x3xf32, #tpu.memory_space<vmem>>, vector<32x1xf32>
    %c0_15 = arith.constant 0 : index
    %c0_16 = arith.constant 0 : index
    %27 = vector.load %arg3[%c0_15, %c0_16] : memref<64x32xbf16, #tpu.memory_space<vmem>>, vector<32x32xbf16>
    %cst_17 = arith.constant dense<0.000000e+00> : vector<32x128xf32>
    %28 = tpu.matmul %27, %8, %cst_17 {dimension_numbers = #tpu.dot_dimension_numbers<[1], [0], [0], [1], [0, 0, 1, 1], [], []>} : vector<32x32xbf16>, vector<32x128xbf16>, vector<32x128xf32> -> vector<32x128xf32>
    %29 = vector.broadcast %24 : vector<32x1xf32> to vector<32x128xf32>
    %30 = arith.addf %28, %29 : vector<32x128xf32>
    %cst_18 = arith.constant 0.000000e+00 : f32
    %31 = vector.broadcast %cst_18 : f32 to vector<32x128xf32>
    %32 = arith.maximumf %30, %31 : vector<32x128xf32>
    %33 = arith.truncf %32 : vector<32x128xf32> to vector<32x128xbf16>
    %c32 = arith.constant 32 : index
    %c0_19 = arith.constant 0 : index
    %34 = vector.load %arg3[%c32, %c0_19] : memref<64x32xbf16, #tpu.memory_space<vmem>>, vector<32x32xbf16>
    %cst_20 = arith.constant dense<0.000000e+00> : vector<32x128xf32>
    %35 = tpu.matmul %34, %33, %cst_20 {dimension_numbers = #tpu.dot_dimension_numbers<[1], [0], [0], [1], [0, 0, 1, 1], [], []>} : vector<32x32xbf16>, vector<32x128xbf16>, vector<32x128xf32> -> vector<32x128xf32>
    %36 = vector.broadcast %25 : vector<32x1xf32> to vector<32x128xf32>
    %37 = arith.addf %35, %36 : vector<32x128xf32>
    %cst_21 = arith.constant 0.000000e+00 : f32
    %38 = vector.broadcast %cst_21 : f32 to vector<32x128xf32>
    %39 = arith.maximumf %37, %38 : vector<32x128xf32>
    %40 = vector.broadcast %26 : vector<32x1xf32> to vector<32x128xf32>
    %41 = arith.mulf %39, %40 : vector<32x128xf32>
    %cst_22 = arith.constant dense<0.000000e+00> : vector<128xf32>
    %42 = vector.multi_reduction <add>, %41, %cst_22 [0] : vector<32x128xf32> to vector<128xf32>
    %43 = vector.shape_cast %42 : vector<128xf32> to vector<1x128xf32>
    %cst_23 = arith.constant 5.000000e-01 : f32
    %44 = vector.broadcast %cst_23 : f32 to vector<1x128xf32>
    %45 = arith.mulf %44, %23 : vector<1x128xf32>
    %46 = arith.addf %14, %45 : vector<1x128xf32>
    %47 = arith.addf %46, %43 : vector<1x128xf32>
    %48 = arith.negf %47 : vector<1x128xf32>
    %49 = math.exp %48 : vector<1x128xf32>
    %cst_24 = arith.constant 1.000000e+00 : f32
    %50 = vector.broadcast %cst_24 : f32 to vector<1x128xf32>
    %51 = arith.addf %50, %49 : vector<1x128xf32>
    %52 = arith.divf %50, %51 : vector<1x128xf32>
    %c0_25 = arith.constant 0 : index
    %c0_26 = arith.constant 0 : index
    %53 = vector.load %arg6[%c0_25, %c0_26] : memref<1x128xf32, #tpu.memory_space<vmem>>, vector<1x128xf32>
    tpu.vector_store %arg6[%c0_25, %c0_26], %52 {strides = array<i32>} : memref<1x128xf32, #tpu.memory_space<vmem>>, vector<1x128xf32>,
    return
  }
  func.func @transform_0(%arg0: i32) -> (i32, i32) {
    %c0_i32 = arith.constant 0 : i32
    %c0_i32_0 = arith.constant 0 : i32
    return %c0_i32, %arg0 : i32, i32
  }
  func.func @transform_1(%arg0: i32) -> (i32, i32) {
    %c0_i32 = arith.constant 0 : i32
    %c0_i32_0 = arith.constant 0 : i32
    %c0_i32_1 = arith.constant 0 : i32
    return %c0_i32, %c0_i32_0 : i32, i32
  }
  func.func @transform_2(%arg0: i32) -> (i32, i32) {
    %c0_i32 = arith.constant 0 : i32
    %c0_i32_0 = arith.constant 0 : i32
    %c0_i32_1 = arith.constant 0 : i32
    return %c0_i32, %c0_i32_0 : i32, i32
  }
  func.func @transform_3(%arg0: i32) -> (i32, i32) {
    %c0_i32 = arith.constant 0 : i32
    %c0_i32_0 = arith.constant 0 : i32
    %c0_i32_1 = arith.constant 0 : i32
    return %c0_i32, %c0_i32_0 : i32, i32
  }
  func.func @transform_4(%arg0: i32) -> (i32, i32) {
    %c0_i32 = arith.constant 0 : i32
    %c0_i32_0 = arith.constant 0 : i32
    %c0_i32_1 = arith.constant 0 : i32
    return %c0_i32, %c0_i32_0 : i32, i32
  }
  func.func @transform_5(%arg0: i32) -> (i32, i32) {
    %c0_i32 = arith.constant 0 : i32
    %c0_i32_0 = arith.constant 0 : i32
    return %arg0, %c0_i32 : i32, i32
  }
}

</mosaic_0001>

<llo_original>
// kernel: tpu_custom_call.1
$region0: #{tpu_custom_call.1}
  #allocation0 [shape = 'u32[]', space=smem, size = 0x4, offset = 0x4, fixed_abs, tag = 'smem constant byte address 0x4 - core index']
  #allocation1 [shape = 'u32[72,128]{1,0:T(1,128)}', space=vmem, size = 0x9000, scoped, tag = 'internal scratch']
  %s0 = inlined_call_operand.vmem [shape: bf16[16,128], index: 0, kind: input, shape index: {}]
  %s1 = inlined_call_operand.vmem [shape: bf16[48,16], index: 1, kind: input, shape index: {}]
  %s2 = inlined_call_operand.vmem [shape: bf16[64,32], index: 2, kind: input, shape index: {}]
  %s3 = inlined_call_operand.vmem [shape: f32[16,2], index: 3, kind: input, shape index: {}]
  %s4 = inlined_call_operand.vmem [shape: f32[32,3], index: 4, kind: input, shape index: {}]
  %s5 = inlined_call_operand.hbm [shape: f32[1,128], index: 5, kind: output, shape index: {}]
  %s6 = sld [smem:[#allocation0]]
  $region30: #{tpu_custom_call.1} parent=0
    _
  %s8 = ssub.s32 1, %s6
  %s9 = scalar_select 0, %s8, %s6
  $region1: #{tpu_custom_call.1} parent=0
    #allocation2 [shape = 'u8[512]{0}', space=vmem, size = 0x400, scoped, tag = 'output window, operand 0, single buffered']
    #allocation3 [shape = 's32[1]{0}', space=sflag, size = 0x4, scoped, tag = 'scoped memory for tpu_custom_call.1']
    %10 = vsyncpa [#allocation3], 0
    // Predicated region
    $region2: #{tpu_custom_call.1} parent=1 // pred_check
      _
    $region3: #{tpu_custom_call.1} parent=1 // pred_check_branch
      %12 = sbr.rel (0) target = $region5
    $region4: #{tpu_custom_call.1} parent=1 // pred_region
      _
    $region5: #{tpu_custom_call.1} parent=1 // pred_fallthru
      _
    // Predicated region
    $region6: #{tpu_custom_call.1} parent=1 // pred_check
      _
    $region7: #{tpu_custom_call.1} parent=1 // pred_check_branch
      %14 = sbr.rel (0) target = $region9
    $region8: #{tpu_custom_call.1} parent=1 // pred_region
      _
    $region9: #{tpu_custom_call.1} parent=1 // pred_fallthru
      _
    // Predicated region
    $region10: #{tpu_custom_call.1} parent=1 // pred_check
      _
    $region11: #{tpu_custom_call.1} parent=1 // pred_check_branch
      %16 = sbr.rel (0) target = $region13
    $region12: #{tpu_custom_call.1} parent=1 // pred_region
      _
    $region13: #{tpu_custom_call.1} parent=1 // pred_fallthru
      _
    // Predicated region
    $region14: #{tpu_custom_call.1} parent=1 // pred_check
      _
    $region15: #{tpu_custom_call.1} parent=1 // pred_check_branch
      %18 = sbr.rel (0) target = $region17
    $region16: #{tpu_custom_call.1} parent=1 // pred_region
      _
    $region17: #{tpu_custom_call.1} parent=1 // pred_fallthru
      _
    // Predicated region
    $region18: #{tpu_custom_call.1} parent=1 // pred_check
      _
    $region19: #{tpu_custom_call.1} parent=1 // pred_check_branch
      %20 = sbr.rel (0) target = $region21
    $region20: #{tpu_custom_call.1} parent=1 // pred_region
      _
    $region21: #{tpu_custom_call.1} parent=1 // pred_fallthru
      _
    %v22 = vld [vmem:[%s0] sm:$0xf]
    %v23 = vld [vmem:[%s0 + $0x4] sm:$0xf]
    %v24 = vunpack.c.l.bf16 %v22
    %v25 = vunpack.c.l.bf16 %v23
    %v26 = vld [vmem:[%s1] sm:$0xf]
    %v27 = vld [vmem:[%s1 + $0x4] sm:$0xf]
    %v28 = vld [vmem:[%s1 + $0x8] sm:$0xf]
    %v29 = vld [vmem:[%s1 + $0xc] sm:$0xf]
    %v30 = vld [vmem:[%s1 + $0x10] sm:$0xf]
    %v31 = vld [vmem:[%s1 + $0x14] sm:$0xf]
    %v38 = vunpack.c.l.b16 %v26
    %v39 = vunpack.c.l.b16 %v27
    %v40 = vunpack.c.l.b16 %v28
    %v41 = vunpack.c.l.b16 %v29
    %v42 = vunpack.c.l.b16 %v30
    %v43 = vunpack.c.l.b16 %v31
    %v44 = vpack.c.b16 %v39, %v38
    %v45 = vpack.c.b16 %v41, %v40
    %v46 = vpack.c.b16 %v43, %v42
    %v49 = vunpack.c.l.b16 %v22
    %v50 = vunpack.c.l.b16 %v23
    %v51 = vpack.c.b16 %v50, %v49
    %vm53 = vcmask 130048
    %v55 = vsel %vm53, %v44, 0
    %v58 = vsel %vm53, %v45, 0
    %v61 = vsel %vm53, %v46, 0
    %63 = vmatpush.bf16.msra.mxu0 0
    %64 = vmatpush.bf16.msra.mxu0 0
    %65 = vmatpush.bf16.msra.mxu0 0
    %66 = vmatpush.bf16.msra.mxu0 0
    %67 = vmatpush.bf16.msra.mxu0 0
    %68 = vmatpush.bf16.msra.mxu0 0
    %69 = vmatpush.bf16.msra.mxu0 0
    %70 = vmatpush.bf16.msra.mxu0 %v51
    %71 = vmatmul.bf16.gmra.mxu0 %v55
    %v72 = vpop.f32.mrf.mxu0
    %v73 = vadd.f32 0.0, %v72
    %v74 = vpop.f32.mrf.mxu0
    %v75 = vadd.f32 0.0, %v74
    %76 = vmatmul.bf16.gmra.mxu0 %v58
    %v77 = vpop.f32.mrf.mxu0
    %v78 = vadd.f32 0.0, %v77
    %v79 = vpop.f32.mrf.mxu0
    %v80 = vadd.f32 0.0, %v79
    %81 = vmatmul.bf16.gmra.mxu0 %v61
    %v82 = vpop.f32.mrf.mxu0
    %v83 = vadd.f32 0.0, %v82
    %v84 = vpop.f32.mrf.mxu0
    %v85 = vadd.f32 0.0, %v84
    %86 = vdwg.mxu0
    %v87 = vmax.f32 %v78, 0.0
    %v88 = vmax.f32 %v80, 0.0
    %v89 = vmax.f32 %v83, 0.0
    %v90 = vmax.f32 %v85, 0.0
    %v91 = vpack.c.bf16 %v88, %v87
    %v92 = vpack.c.bf16 %v90, %v89
    %v93 = vld [vmem:[%s3] sm:$0xff]
    %v94 = vld [vmem:[%s3 + $0x8] sm:$0xff]
    %96 = vset.pattern.permute.xlu0 0
    %97 = vperm.xlu0 %96, %v93
    %v98 = vpop.permute.xlu0 %97
    %101 = vset.pattern.permute.xlu0 0
    %102 = vperm.xlu0 %101, %v94
    %v103 = vpop.permute.xlu0 %102
    %v105 = vmul.f32 %v24, %v98
    %v106 = vmul.f32 %v25, %v103
    %v107 = vadd.f32 %v105, %v106
    %v108 = vrot.slane %v107, 4
    %v109 = vadd.f32 %v107, %v108
    %v110 = vrot.slane %v109, 2
    %v111 = vadd.f32 %v109, %v110
    %v112 = vrot.slane %v111, 1
    %v113 = vadd.f32 %v111, %v112
    %v114 = vmul.f32 %v73, %v73
    %v115 = vmul.f32 %v75, %v75
    %v116 = vadd.f32 %v114, %v115
    %v117 = vrot.slane %v116, 4
    %v118 = vadd.f32 %v116, %v117
    %v119 = vrot.slane %v118, 2
    %v120 = vadd.f32 %v118, %v119
    %v121 = vrot.slane %v120, 1
    %v122 = vadd.f32 %v120, %v121
    %v123 = vmul.f32 %v24, %v24
    %v124 = vmul.f32 %v25, %v25
    %125 = vset.pattern.permute.xlu0 1
    %126 = vperm.xlu0 %125, %v93
    %v127 = vpop.permute.xlu0 %126
    %129 = vset.pattern.permute.xlu0 1
    %130 = vperm.xlu0 %129, %v94
    %v131 = vpop.permute.xlu0 %130
    %v133 = vmul.f32 %v123, %v127
    %v134 = vmul.f32 %v124, %v131
    %v135 = vadd.f32 %v133, %v134
    %v136 = vrot.slane %v135, 4
    %v137 = vadd.f32 %v135, %v136
    %v138 = vrot.slane %v137, 2
    %v139 = vadd.f32 %v137, %v138
    %v140 = vrot.slane %v139, 1
    %v141 = vadd.f32 %v139, %v140
    %v142 = vsub.f32 %v122, %v141
    %v143 = vld [vmem:[%s4] sm:$0xff]
    %v144 = vld [vmem:[%s4 + $0x8] sm:$0xff]
    %v145 = vld [vmem:[%s4 + $0x10] sm:$0xff]
    %v146 = vld [vmem:[%s4 + $0x18] sm:$0xff]
    %v147 = vld [vmem:[%s2] sm:$0xf]
    %v148 = vld [vmem:[%s2 + $0x4] sm:$0xf]
    %v149 = vld [vmem:[%s2 + $0x8] sm:$0xf]
    %v150 = vld [vmem:[%s2 + $0xc] sm:$0xf]
    %152 = vset.pattern.permute.xlu0 0
    %153 = vperm.xlu0 %152, %v143
    %v154 = vpop.permute.xlu0 %153
    %157 = vset.pattern.permute.xlu0 0
    %158 = vperm.xlu0 %157, %v144
    %v159 = vpop.permute.xlu0 %158
    %162 = vset.pattern.permute.xlu0 0
    %163 = vperm.xlu0 %162, %v145
    %v164 = vpop.permute.xlu0 %163
    %167 = vset.pattern.permute.xlu0 0
    %168 = vperm.xlu0 %167, %v146
    %v169 = vpop.permute.xlu0 %168
    %v175 = vunpack.c.l.b16 %v147
    %v176 = vunpack.c.l.b16 %v148
    %v177 = vunpack.c.l.b16 %v149
    %v178 = vunpack.c.l.b16 %v150
    %v179 = vpack.c.b16 %v176, %v175
    %v180 = vpack.c.b16 %v178, %v177
    %vm181 = vcmask 261120
    %v183 = vsel %vm181, %v179, 0
    %v186 = vsel %vm181, %v180, 0
    %188 = vmatpush.bf16.msra.mxu0 0
    %189 = vmatpush.bf16.msra.mxu0 0
    %190 = vmatpush.bf16.msra.mxu0 0
    %191 = vmatpush.bf16.msra.mxu0 0
    %192 = vmatpush.bf16.msra.mxu0 0
    %193 = vmatpush.bf16.msra.mxu0 0
    %194 = vmatpush.bf16.msra.mxu0 %v92
    %195 = vmatpush.bf16.msra.mxu0 %v91
    %196 = vmatmul.bf16.gmra.mxu0 %v183
    %v197 = vpop.f32.mrf.mxu0
    %v198 = vadd.f32 %v154, %v197
    %v199 = vpop.f32.mrf.mxu0
    %v200 = vadd.f32 %v159, %v199
    %201 = vmatmul.bf16.gmra.mxu0 %v186
    %v202 = vpop.f32.mrf.mxu0
    %v203 = vadd.f32 %v164, %v202
    %v204 = vpop.f32.mrf.mxu0
    %v205 = vadd.f32 %v169, %v204
    %206 = vdwg.mxu0
    %v207 = vmax.f32 %v198, 0.0
    %v208 = vmax.f32 %v200, 0.0
    %v209 = vmax.f32 %v203, 0.0
    %v210 = vmax.f32 %v205, 0.0
    %v211 = vpack.c.bf16 %v208, %v207
    %v212 = vpack.c.bf16 %v210, %v209
    %v213 = vld [vmem:[%s2 + $0x10] sm:$0xf]
    %v214 = vld [vmem:[%s2 + $0x14] sm:$0xf]
    %v215 = vld [vmem:[%s2 + $0x18] sm:$0xf]
    %v216 = vld [vmem:[%s2 + $0x1c] sm:$0xf]
    %217 = vset.pattern.permute.xlu0 1
    %218 = vperm.xlu0 %217, %v143
    %v219 = vpop.permute.xlu0 %218
    %221 = vset.pattern.permute.xlu0 1
    %222 = vperm.xlu0 %221, %v144
    %v223 = vpop.permute.xlu0 %222
    %225 = vset.pattern.permute.xlu0 1
    %226 = vperm.xlu0 %225, %v145
    %v227 = vpop.permute.xlu0 %226
    %229 = vset.pattern.permute.xlu0 1
    %230 = vperm.xlu0 %229, %v146
    %v231 = vpop.permute.xlu0 %230
    %v237 = vunpack.c.l.b16 %v213
    %v238 = vunpack.c.l.b16 %v214
    %v239 = vunpack.c.l.b16 %v215
    %v240 = vunpack.c.l.b16 %v216
    %v241 = vpack.c.b16 %v238, %v237
    %v242 = vpack.c.b16 %v240, %v239
    %v244 = vsel %vm181, %v241, 0
    %v247 = vsel %vm181, %v242, 0
    %249 = vmatpush.bf16.msra.mxu0 0
    %250 = vmatpush.bf16.msra.mxu0 0
    %251 = vmatpush.bf16.msra.mxu0 0
    %252 = vmatpush.bf16.msra.mxu0 0
    %253 = vmatpush.bf16.msra.mxu0 0
    %254 = vmatpush.bf16.msra.mxu0 0
    %255 = vmatpush.bf16.msra.mxu0 %v212
    %256 = vmatpush.bf16.msra.mxu0 %v211
    %257 = vmatmul.bf16.gmra.mxu0 %v244
    %v258 = vpop.f32.mrf.mxu0
    %v259 = vadd.f32 %v219, %v258
    %v260 = vpop.f32.mrf.mxu0
    %v261 = vadd.f32 %v223, %v260
    %262 = vmatmul.bf16.gmra.mxu0 %v247
    %v263 = vpop.f32.mrf.mxu0
    %v264 = vadd.f32 %v227, %v263
    %v265 = vpop.f32.mrf.mxu0
    %v266 = vadd.f32 %v231, %v265
    %267 = vdwg.mxu0
    %v268 = vmax.f32 %v259, 0.0
    %v269 = vmax.f32 %v261, 0.0
    %v270 = vmax.f32 %v264, 0.0
    %v271 = vmax.f32 %v266, 0.0
    %272 = vset.pattern.permute.xlu0 2
    %273 = vperm.xlu0 %272, %v143
    %v274 = vpop.permute.xlu0 %273
    %276 = vset.pattern.permute.xlu0 2
    %277 = vperm.xlu0 %276, %v144
    %v278 = vpop.permute.xlu0 %277
    %280 = vset.pattern.permute.xlu0 2
    %281 = vperm.xlu0 %280, %v145
    %v282 = vpop.permute.xlu0 %281
    %284 = vset.pattern.permute.xlu0 2
    %285 = vperm.xlu0 %284, %v146
    %v286 = vpop.permute.xlu0 %285
    %v288 = vmul.f32 %v268, %v274
    %v289 = vmul.f32 %v269, %v278
    %v290 = vmul.f32 %v270, %v282
    %v291 = vmul.f32 %v271, %v286
    %v292 = vadd.f32 %v288, %v289
    %v293 = vadd.f32 %v292, %v290
    %v294 = vadd.f32 %v293, %v291
    %v295 = vrot.slane %v294, 4
    %v296 = vadd.f32 %v294, %v295
    %v297 = vrot.slane %v296, 2
    %v298 = vadd.f32 %v296, %v297
    %v299 = vrot.slane %v298, 1
    %v300 = vadd.f32 %v298, %v299
    %v301 = vmul.f32 %v142, 0.5
    %v302 = vadd.f32 %v113, %v301
    %v303 = vadd.f32 %v302, %v300
    %v304 = vxor.u32 %v303, 2147483648
    %v305 = vmul.f32 %v304, 1.442695
    %v306 = vpow.pop %v305
    %v307 = vadd.f32 %v306, 1.0
    %v308 = vrcp.pop %v307
    %v309 = vmul.f32 %v307, %v308
    %v310 = vsub.f32 1.0, %v309
    %v311 = vmul.f32 %v308, %v310
    %v312 = vadd.f32 %v308, %v311
    %vm313 = vweird.f32 %v307
    %vm314 = vweird.f32 %v308
    %vm315 = vmor %vm313, %vm314
    %v316 = vsel %vm315, %v308, %v312
    %v317 = vand.u32 2147483647, %v307
    %vm318 = vcmp.eq.f32.partialorder %v317, 8.507059e+37
    %v319 = vand.u32 %v307, 2147483648
    %v320 = vor.u32 1.1754944e-38, %v319
    %v321 = vsel %vm318, %v320, %v316
    %v322 = vmul.f32 1.0, %v321
    %323 = vst [vmem:[#allocation2] sm:$0x1] %v322
    // Predicated region
    $region22: #{tpu_custom_call.1} parent=1 // pred_check
      _
    $region23: #{tpu_custom_call.1} parent=1 // pred_check_branch
      %325 = sbr.rel (0) target = $region25
    $region24: #{tpu_custom_call.1} parent=1 // pred_region
      %327 = vsyncadd [#allocation3], 0
      %s329 = sshll.u32 [#allocation2], 4
      %s330 = int_to_ptr.vmem [resolvable:$true] %s329
      %s331 = sshll.u32 %s5, 4
      %s332 = int_to_ptr.hbm [resolvable:$true] %s331
      %334 = dma.vmem_to_hbm [thread:$0]  %s330, 16, %s332, [#allocation3]
    $region25: #{tpu_custom_call.1} parent=1 // pred_fallthru
      _
    // Predicated region
    $region26: #{tpu_custom_call.1} parent=1 // pred_check
      _
    $region27: #{tpu_custom_call.1} parent=1 // pred_check_branch
      %336 = sbr.rel (0) target = $region29
    $region28: #{tpu_custom_call.1} parent=1 // pred_region
      %338 = dma.done [#allocation3], 16
    $region29: #{tpu_custom_call.1} parent=1 // pred_fallthru
      _
    %339 = vsyncpa [#allocation3], 1

</llo_original>
